<compile_context>
chip_gen: v5e
topology: v5e:2x2
jax: 0.10.0
libtpu: 0.0.40
codegen_flags: <defaults>
</compile_context>

<pallas_src>
import functools

import jax
import jax.numpy as jnp
from jax import lax
from jax.experimental import pallas as pl
from jax.experimental.pallas import tpu as pltpu


_TARGET_BLOCK_BYTES = 2 * 1024 * 1024   # ~2 MiB of input per grid step


def _softpool_kernel(x_ref, p_ref, o_ref, *, k, s, TH, CB, Wo, hoist_exp):
    """x_ref: (CB, BH, W) input rows; p_ref: (W, Wo) 0/1 pooling matrix;
    o_ref: (CB, TH, Wo) output tile."""
    p = p_ref[...]                                   # (W, Wo) f32 0/1
    W = p.shape[0]

    if hoist_exp:
        # k > s: windows overlap along H -> compute exp once for the block.
        x = x_ref[...].astype(jnp.float32)           # (CB, BH, W)
        e_full = jnp.exp(x)
        ex_full = e_full * x

    num_h = None                                     # (CB, TH, W): sum exp(x)*x over H window
    den_h = None                                     # (CB, TH, W): sum exp(x)   over H window
    for ki in range(k):
        if hoist_exp:
            lim = ki + (TH - 1) * s + 1
            e = lax.slice(e_full, (0, ki, 0), (CB, lim, W), (1, s, 1))
            ex = lax.slice(ex_full, (0, ki, 0), (CB, lim, W), (1, s, 1))
        else:
            # Non-overlapping windows: sublane-strided slab load straight from
            # the ref, exp fused per slab (no full-tile f32 temporary).
            xs = x_ref[:, pl.ds(ki, TH, stride=s), :].astype(jnp.float32)
            e = jnp.exp(xs)
            ex = e * xs
        num_h = ex if num_h is None else num_h + ex
        den_h = e if den_h is None else den_h + e

    # W pooling on the (otherwise idle) MXU: (CB*TH, W) @ (W, Wo).
    num = jnp.dot(num_h.reshape(CB * TH, W), p, preferred_element_type=jnp.float32)
    den = jnp.dot(den_h.reshape(CB * TH, W), p, preferred_element_type=jnp.float32)
    out = num * pl.reciprocal(den, approx=False)     # (CB*TH, Wo)
    o_ref[...] = out.reshape(CB, TH, Wo).astype(o_ref.dtype)


def _pool_matrix(W, Wo, k, s):
    """(W, Wo) 0/1 matrix: output column wo sums input columns [wo*s, wo*s+k)."""
    w = jnp.arange(W, dtype=jnp.int32)[:, None]
    o = jnp.arange(Wo, dtype=jnp.int32)[None, :]
    return ((w >= o * s) & (w < o * s + k)).astype(jnp.float32)


def soft_pooling_2d(x_nchw, kernel_size, stride=None, padding=0,
                    block_bytes=_TARGET_BLOCK_BYTES):
    """SoftPooling2D forward. x_nchw: (N, C, H, W) float array; NCHW in/out."""
    if stride is None:
        stride = kernel_size
    if padding != 0:
        # TODO(synk): count_include_pad=False padding handling not implemented.
        raise NotImplementedError("padding != 0 not supported")

    k, s = int(kernel_size), int(stride)
    N, C, H, W = x_nchw.shape
    Ho = (H - k) // s + 1
    Wo = (W - k) // s + 1
    NC = N * C
    itemsize = x_nchw.dtype.itemsize
    per_chan_bytes = H * W * itemsize

    # Tiling choice: tile output rows (big images, CB=1) OR block channels
    # (many small feature maps, TH=Ho).  Row tiling needs non-overlapping
    # windows so blocked H indexing (offset = h*TH*s) is exact.
    can_tile_h = (k <= s) and (Ho % 8 == 0) and (Ho * s <= H)
    if can_tile_h and per_chan_bytes > block_bytes:
        CB = 1
        cands = [d for d in range(8, Ho + 1, 8) if Ho % d == 0]
        fitting = [d for d in cands if d * s * W * itemsize <= block_bytes]
        TH = max(fitting) if fitting else min(cands)
        BH = TH * s                       # block index h -> input rows h*TH*s
    else:
        # TODO(synk): halo-tiled H blocking for k > s on very large images.
        TH = Ho
        BH = H
        CB = max(1, min(NC, block_bytes // max(1, per_chan_bytes)))
        d = CB
        while NC % d != 0:
            d -= 1
        if 2 * d >= CB:                   # prefer an exact divisor when close
            CB = d
    n_h = Ho // TH
    grid = (pl.cdiv(NC, CB), n_h)

    x_flat = x_nchw.reshape(NC, H, W)     # free: preserves NCHW memory order
    p = _pool_matrix(W, Wo, k, s)

    kernel = functools.partial(_softpool_kernel, k=k, s=s, TH=TH, CB=CB, Wo=Wo,
                               hoist_exp=(k > s))

    out_flat = pl.pallas_call(
        kernel,
        out_shape=jax.ShapeDtypeStruct((NC, Ho, Wo), x_nchw.dtype),
        grid=grid,
        in_specs=[
            pl.BlockSpec((CB, BH, W), lambda c, h: (c, h, 0)),
            pl.BlockSpec((W, Wo), lambda c, h: (0, 0)),   # fetched once, reused
        ],
        out_specs=pl.BlockSpec((CB, TH, Wo), lambda c, h: (c, h, 0)),
        compiler_params=pltpu.CompilerParams(
            dimension_semantics=("parallel", "parallel"),
            vmem_limit_bytes=32 * 1024 * 1024),
    )(x_flat, p)

    return out_flat.reshape(N, C, Ho, Wo)


def _reference(x_nchw, kernel_size, stride=None):
    """Pure-JAX reference matching the PyTorch module (padding=0)."""
    if stride is None:
        stride = kernel_size
    k, s = kernel_size, stride
    e = jnp.exp(x_nchw)
    window = (1, 1, k, k)
    strides = (1, 1, s, s)
    num_p = lax.reduce_window(e * x_nchw, 0.0, lax.add, window, strides, "VALID")
    den_p = lax.reduce_window(e, 0.0, lax.add, window, strides, "VALID")
    return num_p / den_p


if __name__ == "__main__":
    key = jax.random.PRNGKey(0)
    k1, k2, k3 = jax.random.split(key, 3)

    # Case 1: plainusr's SoftPooling2D(2) (k=2, s=2, pad=0), many small channels
    # -> channel-blocked path (CB > 1, single H tile).
    x1 = jax.random.normal(k1, (2, 4, 16, 16), dtype=jnp.float32)
    out1 = jax.block_until_ready(soft_pooling_2d(x1, kernel_size=2))
    ref1 = _reference(x1, kernel_size=2)
    assert out1.shape == (2, 4, 8, 8), out1.shape
    assert jnp.allclose(out1, ref1, atol=1e-5, rtol=1e-5), "mismatch (case 1)"

    # Case 2: force the row-tiled, pipelined path (CB=1, TH<Ho) with a tiny
    # block budget.
    x2 = jax.random.normal(k2, (1, 3, 64, 48), dtype=jnp.float32)
    out2 = jax.block_until_ready(
        soft_pooling_2d(x2, kernel_size=2, block_bytes=8 * 1024))
    ref2 = _reference(x2, kernel_size=2)
    assert out2.shape == (1, 3, 32, 24), out2.shape
    assert jnp.allclose(out2, ref2, atol=1e-5, rtol=1e-5), "mismatch (case 2)"

    # Case 3: overlapping windows (k > s) -> hoisted-exp path, odd spatial dims.
    x3 = jax.random.normal(k3, (1, 2, 17, 19), dtype=jnp.float32)
    out3 = jax.block_until_ready(soft_pooling_2d(x3, kernel_size=3, stride=2))
    ref3 = _reference(x3, kernel_size=3, stride=2)
    assert out3.shape == (1, 2, 8, 9), out3.shape
    assert jnp.allclose(out3, ref3, atol=1e-5, rtol=1e-5), "mismatch (case 3)"

    print("KERNEL_OK")
</pallas_src>

<mosaic_0001>
module attributes {stable_mosaic.version = 11 : i64} {
  func.func @_softpool_kernel(%arg0: i32, %arg1: i32, %arg2: memref<8x16x16xf32, #tpu.memory_space<vmem>>, %arg3: memref<16x8xf32, #tpu.memory_space<vmem>>, %arg4: memref<8x8x8xf32, #tpu.memory_space<vmem>>) attributes {dimension_semantics = [#tpu.dimension_semantics<parallel>, #tpu.dimension_semantics<parallel>], iteration_bounds = array<i64: 1, 1>, scalar_prefetch = 0 : i64, scratch_operands = 0 : i64, tpu.core_type = #tpu.core_type<tc>, window_params = [{transform_indices = @transform_0, window_bounds = array<i64: 8, 16, 16>}, {pipeline_mode = #tpu.pipeline_mode<synchronous>, transform_indices = @transform_1, window_bounds = array<i64: 16, 8>}, {transform_indices = @transform_2, window_bounds = array<i64: 8, 8, 8>}]} {
    %c0 = arith.constant 0 : index
    %c0_0 = arith.constant 0 : index
    %0 = vector.load %arg3[%c0, %c0_0] : memref<16x8xf32, #tpu.memory_space<vmem>>, vector<16x8xf32>
    %c0_1 = arith.constant 0 : index
    %c0_2 = arith.constant 0 : index
    %c0_3 = arith.constant 0 : index
    %1 = tpu.strided_load %arg2[%c0_1, %c0_2, %c0_3] {strides = array<i32: 1, 2, 1>} : memref<8x16x16xf32, #tpu.memory_space<vmem>>, vector<8x8x16xf32>
    %2 = math.exp %1 : vector<8x8x16xf32>
    %3 = arith.mulf %2, %1 : vector<8x8x16xf32>
    %c0_4 = arith.constant 0 : index
    %c1 = arith.constant 1 : index
    %c0_5 = arith.constant 0 : index
    %4 = tpu.strided_load %arg2[%c0_4, %c1, %c0_5] {strides = array<i32: 1, 2, 1>} : memref<8x16x16xf32, #tpu.memory_space<vmem>>, vector<8x8x16xf32>
    %5 = math.exp %4 : vector<8x8x16xf32>
    %6 = arith.mulf %5, %4 : vector<8x8x16xf32>
    %7 = arith.addf %3, %6 : vector<8x8x16xf32>
    %8 = arith.addf %2, %5 : vector<8x8x16xf32>
    %9 = vector.shape_cast %7 : vector<8x8x16xf32> to vector<64x16xf32>
    %cst = arith.constant dense<0.000000e+00> : vector<64x8xf32>
    %10 = tpu.matmul %9, %0, %cst {dimension_numbers = #tpu.dot_dimension_numbers<[1], [0], [0], [1], [0, 0, 1, 1], [], []>} : vector<64x16xf32>, vector<16x8xf32>, vector<64x8xf32> -> vector<64x8xf32>
    %11 = vector.shape_cast %8 : vector<8x8x16xf32> to vector<64x16xf32>
    %cst_6 = arith.constant dense<0.000000e+00> : vector<64x8xf32>
    %12 = tpu.matmul %11, %0, %cst_6 {dimension_numbers = #tpu.dot_dimension_numbers<[1], [0], [0], [1], [0, 0, 1, 1], [], []>} : vector<64x16xf32>, vector<16x8xf32>, vector<64x8xf32> -> vector<64x8xf32>
    %13 = tpu.reciprocal %12 : vector<64x8xf32> -> vector<64x8xf32>
    %14 = arith.mulf %10, %13 : vector<64x8xf32>
    %15 = vector.shape_cast %14 : vector<64x8xf32> to vector<8x8x8xf32>
    %c0_7 = arith.constant 0 : index
    %c0_8 = arith.constant 0 : index
    %c0_9 = arith.constant 0 : index
    %16 = vector.load %arg4[%c0_7, %c0_8, %c0_9] : memref<8x8x8xf32, #tpu.memory_space<vmem>>, vector<8x8x8xf32>
    tpu.vector_store %arg4[%c0_7, %c0_8, %c0_9], %15 {strides = array<i32>} : memref<8x8x8xf32, #tpu.memory_space<vmem>>, vector<8x8x8xf32>,
    return
  }
  func.func @transform_0(%arg0: i32, %arg1: i32) -> (i32, i32, i32) {
    %c0_i32 = arith.constant 0 : i32
    %c0_i32_0 = arith.constant 0 : i32
    return %arg0, %arg1, %c0_i32 : i32, i32, i32
  }
  func.func @transform_1(%arg0: i32, %arg1: i32) -> (i32, i32) {
    %c0_i32 = arith.constant 0 : i32
    %c0_i32_0 = arith.constant 0 : i32
    %c0_i32_1 = arith.constant 0 : i32
    return %c0_i32, %c0_i32_0 : i32, i32
  }
  func.func @transform_2(%arg0: i32, %arg1: i32) -> (i32, i32, i32) {
    %c0_i32 = arith.constant 0 : i32
    %c0_i32_0 = arith.constant 0 : i32
    return %arg0, %arg1, %c0_i32 : i32, i32, i32
  }
}

</mosaic_0001>

<llo_original>
// kernel: tpu_custom_call.1
$region0: #{tpu_custom_call.1}
  #allocation0 [shape = 'u32[]', space=smem, size = 0x4, offset = 0x4, fixed_abs, tag = 'smem constant byte address 0x4 - core index']
  #allocation1 [shape = 'u32[72,128]{1,0:T(1,128)}', space=vmem, size = 0x9000, scoped, tag = 'internal scratch']
  %s0 = inlined_call_operand.hbm [shape: f32[8,16,16], index: 0, kind: input, shape index: {}]
  %s1 = inlined_call_operand.vmem [shape: f32[16,8], index: 1, kind: input, shape index: {}]
  %s2 = inlined_call_operand.hbm [shape: f32[8,8,8], index: 2, kind: output, shape index: {}]
  %s3 = sld [smem:[#allocation0]]
  $region22: #{tpu_custom_call.1} parent=0
    _
  %s5 = ssub.s32 1, %s3
  %s6 = scalar_select 0, %s5, %s3
  $region1: #{tpu_custom_call.1} parent=0
    #allocation2 [shape = 'u8[65536]{0}', space=vmem, size = 0x10000, scoped, tag = 'input window, operand 0, single buffered']
    #allocation3 [shape = 's32[1]{0}', space=sflag, size = 0x4, scoped, tag = 'scoped memory for tpu_custom_call.1']
    #allocation4 [shape = 's32[1]{0}', space=sflag, size = 0x4, scoped, tag = 'scoped memory for tpu_custom_call.1']
    #allocation5 [shape = 'u8[32768]{0}', space=vmem, size = 0x8000, scoped, tag = 'output window, operand 0, single buffered']
    %7 = vsyncpa [#allocation3], 0
    %8 = vsyncpa [#allocation4], 0
    // Predicated region
    $region2: #{tpu_custom_call.1} parent=1 // pred_check
      _
    $region3: #{tpu_custom_call.1} parent=1 // pred_check_branch
      %10 = sbr.rel (0) target = $region5
    $region4: #{tpu_custom_call.1} parent=1 // pred_region
      %12 = vsyncadd [#allocation3], 0
      %s13 = sshll.u32 %s0, 4
      %s14 = int_to_ptr.hbm [resolvable:$true] %s13
      %s15 = sshll.u32 [#allocation2], 4
      %s16 = int_to_ptr.vmem [resolvable:$true] %s15
      %21 = dma.hbm_to_vmem [thread:$0]  %s14, 2048, %s16, [#allocation3], 128, 128, 8
    $region5: #{tpu_custom_call.1} parent=1 // pred_fallthru
      _
    // Predicated region
    $region6: #{tpu_custom_call.1} parent=1 // pred_check
      _
    $region7: #{tpu_custom_call.1} parent=1 // pred_check_branch
      %23 = sbr.rel (0) target = $region9
    $region8: #{tpu_custom_call.1} parent=1 // pred_region
      _
    $region9: #{tpu_custom_call.1} parent=1 // pred_fallthru
      _
    // Predicated region
    $region10: #{tpu_custom_call.1} parent=1 // pred_check
      _
    $region11: #{tpu_custom_call.1} parent=1 // pred_check_branch
      %25 = sbr.rel (0) target = $region13
    $region12: #{tpu_custom_call.1} parent=1 // pred_region
      %27 = dma.done [#allocation3], 2048
    $region13: #{tpu_custom_call.1} parent=1 // pred_fallthru
      _
    %v28 = vld [vmem:[%s1] sm:$0xff]
    %v29 = vld [vmem:[%s1 + $0x8] sm:$0xff]
    %v30 = vld [vmem:[#allocation2] ss:$2 sm:$0xff]
    %s31 = scalar_lea.vmem [#allocation2], 16
    %v32 = vld [vmem:[%s31] ss:$2 sm:$0xff]
    %s33 = scalar_lea.vmem [#allocation2], 32
    %v34 = vld [vmem:[%s33] ss:$2 sm:$0xff]
    %s35 = scalar_lea.vmem [#allocation2], 48
    %v36 = vld [vmem:[%s35] ss:$2 sm:$0xff]
    %s37 = scalar_lea.vmem [#allocation2], 64
    %v38 = vld [vmem:[%s37] ss:$2 sm:$0xff]
    %s39 = scalar_lea.vmem [#allocation2], 80
    %v40 = vld [vmem:[%s39] ss:$2 sm:$0xff]
    %s41 = scalar_lea.vmem [#allocation2], 96
    %v42 = vld [vmem:[%s41] ss:$2 sm:$0xff]
    %s43 = scalar_lea.vmem [#allocation2], 112
    %v44 = vld [vmem:[%s43] ss:$2 sm:$0xff]
    %v45 = vmul.f32 %v30, 1.442695
    %v46 = vpow.pop %v45
    %v47 = vmul.f32 %v32, 1.442695
    %v48 = vpow.pop %v47
    %v49 = vmul.f32 %v34, 1.442695
    %v50 = vpow.pop %v49
    %v51 = vmul.f32 %v36, 1.442695
    %v52 = vpow.pop %v51
    %v53 = vmul.f32 %v38, 1.442695
    %v54 = vpow.pop %v53
    %v55 = vmul.f32 %v40, 1.442695
    %v56 = vpow.pop %v55
    %v57 = vmul.f32 %v42, 1.442695
    %v58 = vpow.pop %v57
    %v59 = vmul.f32 %v44, 1.442695
    %v60 = vpow.pop %v59
    %v61 = vmul.f32 %v46, %v30
    %v62 = vmul.f32 %v48, %v32
    %v63 = vmul.f32 %v50, %v34
    %v64 = vmul.f32 %v52, %v36
    %v65 = vmul.f32 %v54, %v38
    %v66 = vmul.f32 %v56, %v40
    %v67 = vmul.f32 %v58, %v42
    %v68 = vmul.f32 %v60, %v44
    %s69 = scalar_lea.vmem [#allocation2], 1
    %v70 = vld [vmem:[%s69] ss:$2 sm:$0xff]
    %s71 = scalar_lea.vmem [#allocation2], 17
    %v72 = vld [vmem:[%s71] ss:$2 sm:$0xff]
    %s73 = scalar_lea.vmem [#allocation2], 33
    %v74 = vld [vmem:[%s73] ss:$2 sm:$0xff]
    %s75 = scalar_lea.vmem [#allocation2], 49
    %v76 = vld [vmem:[%s75] ss:$2 sm:$0xff]
    %s77 = scalar_lea.vmem [#allocation2], 65
    %v78 = vld [vmem:[%s77] ss:$2 sm:$0xff]
    %s79 = scalar_lea.vmem [#allocation2], 81
    %v80 = vld [vmem:[%s79] ss:$2 sm:$0xff]
    %s81 = scalar_lea.vmem [#allocation2], 97
    %v82 = vld [vmem:[%s81] ss:$2 sm:$0xff]
    %s83 = scalar_lea.vmem [#allocation2], 113
    %v84 = vld [vmem:[%s83] ss:$2 sm:$0xff]
    %v85 = vmul.f32 %v70, 1.442695
    %v86 = vpow.pop %v85
    %v87 = vmul.f32 %v72, 1.442695
    %v88 = vpow.pop %v87
    %v89 = vmul.f32 %v74, 1.442695
    %v90 = vpow.pop %v89
    %v91 = vmul.f32 %v76, 1.442695
    %v92 = vpow.pop %v91
    %v93 = vmul.f32 %v78, 1.442695
    %v94 = vpow.pop %v93
    %v95 = vmul.f32 %v80, 1.442695
    %v96 = vpow.pop %v95
    %v97 = vmul.f32 %v82, 1.442695
    %v98 = vpow.pop %v97
    %v99 = vmul.f32 %v84, 1.442695
    %v100 = vpow.pop %v99
    %v101 = vmul.f32 %v86, %v70
    %v102 = vmul.f32 %v88, %v72
    %v103 = vmul.f32 %v90, %v74
    %v104 = vmul.f32 %v92, %v76
    %v105 = vmul.f32 %v94, %v78
    %v106 = vmul.f32 %v96, %v80
    %v107 = vmul.f32 %v98, %v82
    %v108 = vmul.f32 %v100, %v84
    %v109 = vadd.f32 %v61, %v101
    %v110 = vadd.f32 %v62, %v102
    %v111 = vadd.f32 %v63, %v103
    %v112 = vadd.f32 %v64, %v104
    %v113 = vadd.f32 %v65, %v105
    %v114 = vadd.f32 %v66, %v106
    %v115 = vadd.f32 %v67, %v107
    %v116 = vadd.f32 %v68, %v108
    %v117 = vadd.f32 %v46, %v86
    %v118 = vadd.f32 %v48, %v88
    %v119 = vadd.f32 %v50, %v90
    %v120 = vadd.f32 %v52, %v92
    %v121 = vadd.f32 %v54, %v94
    %v122 = vadd.f32 %v56, %v96
    %v123 = vadd.f32 %v58, %v98
    %v124 = vadd.f32 %v60, %v100
    %vm125 = vcmask 130048
    %v127 = vsel %vm125, %v109, 0
    %v130 = vsel %vm125, %v110, 0
    %v133 = vsel %vm125, %v111, 0
    %v136 = vsel %vm125, %v112, 0
    %v139 = vsel %vm125, %v113, 0
    %v142 = vsel %vm125, %v114, 0
    %v145 = vsel %vm125, %v115, 0
    %v148 = vsel %vm125, %v116, 0
    %150 = vmatpush.msra.mxu0 0.0
    %151 = vmatpush.msra.mxu0 0.0
    %152 = vmatpush.msra.mxu0 0.0
    %153 = vmatpush.msra.mxu0 0.0
    %154 = vmatpush.msra.mxu0 0.0
    %155 = vmatpush.msra.mxu0 0.0
    %156 = vmatpush.msra.mxu0 0.0
    %157 = vmatpush.msra.mxu0 0.0
    %158 = vmatpush.msra.mxu0 0.0
    %159 = vmatpush.msra.mxu0 0.0
    %160 = vmatpush.msra.mxu0 0.0
    %161 = vmatpush.msra.mxu0 0.0
    %162 = vmatpush.msra.mxu0 0.0
    %163 = vmatpush.msra.mxu0 0.0
    %164 = vmatpush.msra.mxu0 %v29
    %165 = vmatpush.msra.mxu0 %v28
    %166 = vmatmul.f32.gmra.mxu0 %v127
    %v167 = vpop.f32.mrf.mxu0
    %v168 = vadd.f32 0.0, %v167
    %169 = vmatmul.f32.gmra.mxu0 %v130
    %v170 = vpop.f32.mrf.mxu0
    %v171 = vadd.f32 0.0, %v170
    %172 = vmatmul.f32.gmra.mxu0 %v133
    %v173 = vpop.f32.mrf.mxu0
    %v174 = vadd.f32 0.0, %v173
    %175 = vmatmul.f32.gmra.mxu0 %v136
    %v176 = vpop.f32.mrf.mxu0
    %v177 = vadd.f32 0.0, %v176
    %178 = vmatmul.f32.gmra.mxu0 %v139
    %v179 = vpop.f32.mrf.mxu0
    %v180 = vadd.f32 0.0, %v179
    %181 = vmatmul.f32.gmra.mxu0 %v142
    %v182 = vpop.f32.mrf.mxu0
    %v183 = vadd.f32 0.0, %v182
    %184 = vmatmul.f32.gmra.mxu0 %v145
    %v185 = vpop.f32.mrf.mxu0
    %v186 = vadd.f32 0.0, %v185
    %187 = vmatmul.f32.gmra.mxu0 %v148
    %v188 = vpop.f32.mrf.mxu0
    %v189 = vadd.f32 0.0, %v188
    %190 = vdwg.mxu0
    %v192 = vsel %vm125, %v117, 0
    %v195 = vsel %vm125, %v118, 0
    %v198 = vsel %vm125, %v119, 0
    %v201 = vsel %vm125, %v120, 0
    %v204 = vsel %vm125, %v121, 0
    %v207 = vsel %vm125, %v122, 0
    %v210 = vsel %vm125, %v123, 0
    %v213 = vsel %vm125, %v124, 0
    %215 = vmatpush.msra.mxu0 0.0
    %216 = vmatpush.msra.mxu0 0.0
    %217 = vmatpush.msra.mxu0 0.0
    %218 = vmatpush.msra.mxu0 0.0
    %219 = vmatpush.msra.mxu0 0.0
    %220 = vmatpush.msra.mxu0 0.0
    %221 = vmatpush.msra.mxu0 0.0
    %222 = vmatpush.msra.mxu0 0.0
    %223 = vmatpush.msra.mxu0 0.0
    %224 = vmatpush.msra.mxu0 0.0
    %225 = vmatpush.msra.mxu0 0.0
    %226 = vmatpush.msra.mxu0 0.0
    %227 = vmatpush.msra.mxu0 0.0
    %228 = vmatpush.msra.mxu0 0.0
    %229 = vmatpush.msra.mxu0 %v29
    %230 = vmatpush.msra.mxu0 %v28
    %231 = vmatmul.f32.gmra.mxu0 %v192
    %v232 = vpop.f32.mrf.mxu0
    %v233 = vadd.f32 0.0, %v232
    %234 = vmatmul.f32.gmra.mxu0 %v195
    %v235 = vpop.f32.mrf.mxu0
    %v236 = vadd.f32 0.0, %v235
    %237 = vmatmul.f32.gmra.mxu0 %v198
    %v238 = vpop.f32.mrf.mxu0
    %v239 = vadd.f32 0.0, %v238
    %240 = vmatmul.f32.gmra.mxu0 %v201
    %v241 = vpop.f32.mrf.mxu0
    %v242 = vadd.f32 0.0, %v241
    %243 = vmatmul.f32.gmra.mxu0 %v204
    %v244 = vpop.f32.mrf.mxu0
    %v245 = vadd.f32 0.0, %v244
    %246 = vmatmul.f32.gmra.mxu0 %v207
    %v247 = vpop.f32.mrf.mxu0
    %v248 = vadd.f32 0.0, %v247
    %249 = vmatmul.f32.gmra.mxu0 %v210
    %v250 = vpop.f32.mrf.mxu0
    %v251 = vadd.f32 0.0, %v250
    %252 = vmatmul.f32.gmra.mxu0 %v213
    %v253 = vpop.f32.mrf.mxu0
    %v254 = vadd.f32 0.0, %v253
    %255 = vdwg.mxu0
    %v256 = vrcp.pop %v233
    %v257 = vmul.f32 %v233, %v256
    %v258 = vsub.f32 1.0, %v257
    %v259 = vmul.f32 %v256, %v258
    %v260 = vadd.f32 %v256, %v259
    %vm261 = vweird.f32 %v233
    %vm262 = vweird.f32 %v256
    %vm263 = vmor %vm261, %vm262
    %v264 = vsel %vm263, %v256, %v260
    %v265 = vand.u32 2147483647, %v233
    %vm266 = vcmp.eq.f32.partialorder %v265, 8.507059e+37
    %v267 = vand.u32 %v233, 2147483648
    %v268 = vor.u32 1.1754944e-38, %v267
    %v269 = vsel %vm266, %v268, %v264
    %v270 = vrcp.pop %v236
    %v271 = vmul.f32 %v236, %v270
    %v272 = vsub.f32 1.0, %v271
    %v273 = vmul.f32 %v270, %v272
    %v274 = vadd.f32 %v270, %v273
    %vm275 = vweird.f32 %v236
    %vm276 = vweird.f32 %v270
    %vm277 = vmor %vm275, %vm276
    %v278 = vsel %vm277, %v270, %v274
    %v279 = vand.u32 2147483647, %v236
    %vm280 = vcmp.eq.f32.partialorder %v279, 8.507059e+37
    %v281 = vand.u32 %v236, 2147483648
    %v282 = vor.u32 1.1754944e-38, %v281
    %v283 = vsel %vm280, %v282, %v278
    %v284 = vrcp.pop %v239
    %v285 = vmul.f32 %v239, %v284
    %v286 = vsub.f32 1.0, %v285
    %v287 = vmul.f32 %v284, %v286
    %v288 = vadd.f32 %v284, %v287
    %vm289 = vweird.f32 %v239
    %vm290 = vweird.f32 %v284
    %vm291 = vmor %vm289, %vm290
    %v292 = vsel %vm291, %v284, %v288
    %v293 = vand.u32 2147483647, %v239
    %vm294 = vcmp.eq.f32.partialorder %v293, 8.507059e+37
    %v295 = vand.u32 %v239, 2147483648
    %v296 = vor.u32 1.1754944e-38, %v295
    %v297 = vsel %vm294, %v296, %v292
    %v298 = vrcp.pop %v242
    %v299 = vmul.f32 %v242, %v298
    %v300 = vsub.f32 1.0, %v299
    %v301 = vmul.f32 %v298, %v300
    %v302 = vadd.f32 %v298, %v301
    %vm303 = vweird.f32 %v242
    %vm304 = vweird.f32 %v298
    %vm305 = vmor %vm303, %vm304
    %v306 = vsel %vm305, %v298, %v302
    %v307 = vand.u32 2147483647, %v242
    %vm308 = vcmp.eq.f32.partialorder %v307, 8.507059e+37
    %v309 = vand.u32 %v242, 2147483648
    %v310 = vor.u32 1.1754944e-38, %v309
    %v311 = vsel %vm308, %v310, %v306
    %v312 = vrcp.pop %v245
    %v313 = vmul.f32 %v245, %v312
    %v314 = vsub.f32 1.0, %v313
    %v315 = vmul.f32 %v312, %v314
    %v316 = vadd.f32 %v312, %v315
    %vm317 = vweird.f32 %v245
    %vm318 = vweird.f32 %v312
    %vm319 = vmor %vm317, %vm318
    %v320 = vsel %vm319, %v312, %v316
    %v321 = vand.u32 2147483647, %v245
    %vm322 = vcmp.eq.f32.partialorder %v321, 8.507059e+37
    %v323 = vand.u32 %v245, 2147483648
    %v324 = vor.u32 1.1754944e-38, %v323
    %v325 = vsel %vm322, %v324, %v320
    %v326 = vrcp.pop %v248
    %v327 = vmul.f32 %v248, %v326
    %v328 = vsub.f32 1.0, %v327
    %v329 = vmul.f32 %v326, %v328
    %v330 = vadd.f32 %v326, %v329
    %vm331 = vweird.f32 %v248
    %vm332 = vweird.f32 %v326
    %vm333 = vmor %vm331, %vm332
    %v334 = vsel %vm333, %v326, %v330
    %v335 = vand.u32 2147483647, %v248
    %vm336 = vcmp.eq.f32.partialorder %v335, 8.507059e+37
    %v337 = vand.u32 %v248, 2147483648
    %v338 = vor.u32 1.1754944e-38, %v337
    %v339 = vsel %vm336, %v338, %v334
    %v340 = vrcp.pop %v251
    %v341 = vmul.f32 %v251, %v340
    %v342 = vsub.f32 1.0, %v341
    %v343 = vmul.f32 %v340, %v342
    %v344 = vadd.f32 %v340, %v343
    %vm345 = vweird.f32 %v251
    %vm346 = vweird.f32 %v340
    %vm347 = vmor %vm345, %vm346
    %v348 = vsel %vm347, %v340, %v344
    %v349 = vand.u32 2147483647, %v251
    %vm350 = vcmp.eq.f32.partialorder %v349, 8.507059e+37
    %v351 = vand.u32 %v251, 2147483648
    %v352 = vor.u32 1.1754944e-38, %v351
    %v353 = vsel %vm350, %v352, %v348
    %v354 = vrcp.pop %v254
    %v355 = vmul.f32 %v254, %v354
    %v356 = vsub.f32 1.0, %v355
    %v357 = vmul.f32 %v354, %v356
    %v358 = vadd.f32 %v354, %v357
    %vm359 = vweird.f32 %v254
    %vm360 = vweird.f32 %v354
    %vm361 = vmor %vm359, %vm360
    %v362 = vsel %vm361, %v354, %v358
    %v363 = vand.u32 2147483647, %v254
    %vm364 = vcmp.eq.f32.partialorder %v363, 8.507059e+37
    %v365 = vand.u32 %v254, 2147483648
    %v366 = vor.u32 1.1754944e-38, %v365
    %v367 = vsel %vm364, %v366, %v362
    %v368 = vmul.f32 %v168, %v269
    %v369 = vmul.f32 %v171, %v283
    %v370 = vmul.f32 %v174, %v297
    %v371 = vmul.f32 %v177, %v311
    %v372 = vmul.f32 %v180, %v325
    %v373 = vmul.f32 %v183, %v339
    %v374 = vmul.f32 %v186, %v353
    %v375 = vmul.f32 %v189, %v367
    %vm376 = vcmask 64512
    %377 = vst.msk [vmem:[#allocation5] sm:$0xff] %vm376, %v368
    %378 = vst.msk [vmem:[#allocation5 + $0x8] sm:$0xff] %vm376, %v369
    %379 = vst.msk [vmem:[#allocation5 + $0x10] sm:$0xff] %vm376, %v370
    %380 = vst.msk [vmem:[#allocation5 + $0x18] sm:$0xff] %vm376, %v371
    %381 = vst.msk [vmem:[#allocation5 + $0x20] sm:$0xff] %vm376, %v372
    %382 = vst.msk [vmem:[#allocation5 + $0x28] sm:$0xff] %vm376, %v373
    %383 = vst.msk [vmem:[#allocation5 + $0x30] sm:$0xff] %vm376, %v374
    %384 = vst.msk [vmem:[#allocation5 + $0x38] sm:$0xff] %vm376, %v375
    // Predicated region
    $region14: #{tpu_custom_call.1} parent=1 // pred_check
      _
    $region15: #{tpu_custom_call.1} parent=1 // pred_check_branch
      %386 = sbr.rel (0) target = $region17
    $region16: #{tpu_custom_call.1} parent=1 // pred_region
      %388 = vsyncadd [#allocation4], 0
      %s389 = sshll.u32 [#allocation5], 4
      %s390 = int_to_ptr.vmem [resolvable:$true] %s389
      %s391 = sshll.u32 %s2, 4
      %s392 = int_to_ptr.hbm [resolvable:$true] %s391
      %397 = dma.vmem_to_hbm [thread:$0]  %s390, 1024, %s392, [#allocation4], 128, 128, 8
    $region17: #{tpu_custom_call.1} parent=1 // pred_fallthru
      _
    // Predicated region
    $region18: #{tpu_custom_call.1} parent=1 // pred_check
      _
    $region19: #{tpu_custom_call.1} parent=1 // pred_check_branch
      %399 = sbr.rel (0) target = $region21
    $region20: #{tpu_custom_call.1} parent=1 // pred_region
      %401 = dma.done [#allocation4], 1024
    $region21: #{tpu_custom_call.1} parent=1 // pred_fallthru
      _
    %402 = vsyncpa [#allocation3], 1
    %403 = vsyncpa [#allocation4], 1

</llo_original>
